<compile_context>
chip_gen: v6e
topology: v6e:2x2x1
jax: 0.10.0
libtpu: 0.0.40
codegen_flags: <defaults>
</compile_context>

<pallas_src>
import functools
import math

import jax
import jax.numpy as jnp
from jax.experimental import pallas as pl
from jax.experimental.pallas import tpu as pltpu


def _round_up(x, m):
    return ((x + m - 1) // m) * m


# -----------------------------------------------------------------------------
# Pallas kernels
# -----------------------------------------------------------------------------
def _item_head_kernel(h_ref, w_ref, tgt_ref, logp_ref, ll_ref,
                      m_ref, s_ref, dot_ref, tsum_ref, *, tn):
    """Fused item head, tiled over the item axis.

    h_ref   : [B, D]   last-non-pad-token hidden states (resident, fetched once)
    w_ref   : [TN, D]  item-embedding weight tile (native nn.Linear layout)
    tgt_ref : [B, TN]  multinomial target tile
    logp_ref: [B, N]   item log-probabilities (VMEM-resident output)
    ll_ref  : [B, 128] per-row log-likelihood, lane-broadcast (written once)
    m/s/dot/tsum_ref : [B, 1] f32 VMEM scratch accumulators
    """
    j = pl.program_id(0)

    @pl.when(j == 0)
    def _():
        m_ref[...] = jnp.full_like(m_ref, -jnp.inf)
        s_ref[...] = jnp.zeros_like(s_ref)
        dot_ref[...] = jnp.zeros_like(dot_ref)
        tsum_ref[...] = jnp.zeros_like(tsum_ref)

    # scores[b, n] = sum_d h[b, d] * w[n, d]   (MXU, f32 accumulation)
    scores = jax.lax.dot_general(
        h_ref[...], w_ref[...],
        dimension_numbers=(((1,), (1,)), ((), ())),
        preferred_element_type=jnp.float32)                      # [B, TN]
    tgt = tgt_ref[...].astype(jnp.float32)                       # [B, TN]

    # online logsumexp across item tiles
    tile_max = jnp.max(scores, axis=-1, keepdims=True)           # [B, 1]
    m_new = jnp.maximum(m_ref[...], tile_max)
    s_ref[...] = (s_ref[...] * jnp.exp(m_ref[...] - m_new)
                  + jnp.sum(jnp.exp(scores - m_new), axis=-1, keepdims=True))
    m_ref[...] = m_new

    # deferred log-likelihood terms:  ll = sum(scores*tgt) - lse * sum(tgt)
    dot_ref[...] = dot_ref[...] + jnp.sum(scores * tgt, axis=-1, keepdims=True)
    tsum_ref[...] = tsum_ref[...] + jnp.sum(tgt, axis=-1, keepdims=True)

    # stash raw scores in the VMEM-resident output; rescaled at the last tile
    start = pl.multiple_of(j * tn, tn)
    logp_ref[:, pl.ds(start, tn)] = scores.astype(logp_ref.dtype)

    @pl.when(j == pl.num_programs(0) - 1)
    def _():
        lse = m_ref[...] + jnp.log(s_ref[...])                   # [B, 1]
        logp_ref[...] = logp_ref[...] - lse.astype(logp_ref.dtype)
        ll = dot_ref[...] - lse * tsum_ref[...]                  # [B, 1]
        ll_ref[...] = jnp.broadcast_to(ll, ll_ref.shape).astype(ll_ref.dtype)


def _sse_kernel(a_ref, b_ref, out_ref, acc_ref):
    """Tiled sum of squared errors: accumulate per row-block, write once."""
    @pl.when(pl.program_id(0) == 0)
    def _():
        acc_ref[...] = jnp.zeros_like(acc_ref)

    d = a_ref[...].astype(jnp.float32) - b_ref[...].astype(jnp.float32)
    acc_ref[...] = acc_ref[...] + jnp.sum(d * d)

    @pl.when(pl.program_id(0) == pl.num_programs(0) - 1)
    def _():
        out_ref[...] = acc_ref[...]


# -----------------------------------------------------------------------------
# Wrappers around pallas_call
# -----------------------------------------------------------------------------
def item_head_log_probs(last_hidden, item_emb_weight, target_ids):
    """last_hidden [B, D], item_emb_weight [N, D] (native layout), targets [B, N]."""
    B, D = last_hidden.shape
    N = item_emb_weight.shape[0]

    # lane-dense item tile (multiple of 256 preferred for the 2x256 MXU);
    # falls back to the full item axis when no aligned divisor exists.
    TN = N
    for cand in (2048, 1024, 512, 256, 128):
        if N % cand == 0:
            TN = cand
            break
    grid = (N // TN,)

    # TODO(synk): the [B, N] log-prob output is kept VMEM-resident across the
    # item tiles; for extremely large num_items * batch this would need a
    # second (parallel) sweep writing tiled logp blocks instead.
    logp, ll = pl.pallas_call(
        functools.partial(_item_head_kernel, tn=TN),
        out_shape=(jax.ShapeDtypeStruct((B, N), jnp.float32),
                   jax.ShapeDtypeStruct((B, 128), jnp.float32)),
        grid_spec=pltpu.PrefetchScalarGridSpec(
            num_scalar_prefetch=0,
            grid=grid,
            in_specs=[
                pl.BlockSpec((B, D), lambda j: (0, 0)),    # hidden, fetched once
                pl.BlockSpec((TN, D), lambda j: (j, 0)),   # weight tile (streamed)
                pl.BlockSpec((B, TN), lambda j: (0, j)),   # target tile
            ],
            out_specs=[
                pl.BlockSpec((B, N), lambda j: (0, 0)),    # resident log-probs
                pl.BlockSpec((B, 128), lambda j: (0, 0)),  # per-row ll (wide)
            ],
            scratch_shapes=[pltpu.VMEM((B, 1), jnp.float32)] * 4),
        compiler_params=pltpu.CompilerParams(
            dimension_semantics=("arbitrary",)),
    )(last_hidden, item_emb_weight, target_ids)
    return logp, ll[:, 0]


def sse_sum(a, b, *, tile_rows=256):
    """Sum of squared errors between two same-shaped tensors (tiled reduction)."""
    assert a.shape == b.shape
    D = a.shape[-1]
    R = math.prod(a.shape[:-1])
    a2 = a.reshape(R, D)
    b2 = b.reshape(R, D)
    Rp = _round_up(R, tile_rows)
    if Rp != R:
        pad = Rp - R
        # zero-padding both operands contributes exactly 0 to the SSE
        a2 = jnp.pad(a2, ((0, pad), (0, 0)))
        b2 = jnp.pad(b2, ((0, pad), (0, 0)))

    out = pl.pallas_call(
        _sse_kernel,
        out_shape=jax.ShapeDtypeStruct((1, 1), jnp.float32),
        grid_spec=pltpu.PrefetchScalarGridSpec(
            num_scalar_prefetch=0,
            grid=(Rp // tile_rows,),
            in_specs=[pl.BlockSpec((tile_rows, D), lambda i: (i, 0)),
                      pl.BlockSpec((tile_rows, D), lambda i: (i, 0))],
            out_specs=pl.BlockSpec((1, 1), lambda i: (0, 0)),
            scratch_shapes=[pltpu.VMEM((1, 1), jnp.float32)]),
        compiler_params=pltpu.CompilerParams(
            dimension_semantics=("arbitrary",)),
    )(a2, b2)
    return out[0, 0]


# -----------------------------------------------------------------------------
# Synthetic base model (the real CollaborativeGPT base model is injected
# externally in the PyTorch code; here we use a deterministic stand-in).
# -----------------------------------------------------------------------------
# TODO(synk): the full GPT2 transformer stack of the external base_model is not
# replicated here; the stand-in base model is token+position embeddings + LayerNorm.
def base_model_embed(params, ids):
    return params["wte"][ids]                                             # [B, T, D]


def base_model_forward(params, input_ids, attention_mask):
    T = input_ids.shape[1]
    x = base_model_embed(params, input_ids) + params["wpe"][jnp.arange(T)][None]
    mu = jnp.mean(x, axis=-1, keepdims=True)
    var = jnp.var(x, axis=-1, keepdims=True)
    return (x - mu) * jax.lax.rsqrt(var + 1e-5)


# -----------------------------------------------------------------------------
# Module forward (mirrors CollaborativeGPTwithItemRecommendHead.forward)
# -----------------------------------------------------------------------------
def collaborative_recommend_forward(params, config, input_ids, target_ids,
                                    attention_mask, regularize=False,
                                    lambda_V=None, main_ids=None,
                                    content_embeds=None):
    B = input_ids.shape[0]
    hidden_states = base_model_forward(params, input_ids, attention_mask)

    # last non-pad token gather (glue). Note: like PyTorch, an all-zero mask
    # row yields index -1 which wraps to the last position.
    last_idx = jnp.sum(attention_mask.astype(jnp.int32), axis=1) - 1      # [B]
    last_hidden = hidden_states[jnp.arange(B), last_idx, :]               # [B, D]

    # item_head.weight is tied to the item embeddings (native [N, D] layout;
    # no wrapper-side transpose or dtype cast)
    item_start = config["vocab_size"] + config["num_users"]
    item_emb_weight = params["wte"][item_start:item_start + config["num_items"]]

    item_log_probs, ll = item_head_log_probs(last_hidden, item_emb_weight,
                                             target_ids)
    neg_ll = -jnp.mean(ll)

    if regularize:
        Tp = input_ids.shape[1]
        rec_prompt = base_model_embed(params, input_ids)
        rec_target = base_model_embed(params, main_ids)
        # no concat: two tiled SSE kernel calls against the matching slices
        regularize_loss = lambda_V * (
            sse_sum(rec_prompt, content_embeds[:, :Tp])
            + sse_sum(rec_target, content_embeds[:, Tp:]))
        neg_ll = neg_ll + regularize_loss
        return neg_ll, regularize_loss, item_log_probs
    return neg_ll, item_log_probs


# -----------------------------------------------------------------------------
# Pure-JAX reference for verification
# -----------------------------------------------------------------------------
def reference_forward(params, config, input_ids, target_ids, attention_mask,
                      lambda_V, main_ids, content_embeds):
    B = input_ids.shape[0]
    hidden_states = base_model_forward(params, input_ids, attention_mask)
    last_idx = jnp.sum(attention_mask.astype(jnp.int32), axis=1) - 1
    last_hidden = hidden_states[jnp.arange(B), last_idx, :]
    item_start = config["vocab_size"] + config["num_users"]
    W = params["wte"][item_start:item_start + config["num_items"]]
    scores = last_hidden @ W.T
    logp = jax.nn.log_softmax(scores, axis=-1)
    neg_ll = -jnp.mean(jnp.sum(logp * target_ids, axis=-1))
    rec = jnp.concatenate([base_model_embed(params, input_ids),
                           base_model_embed(params, main_ids)], axis=1)
    reg = lambda_V * jnp.sum((rec - content_embeds) ** 2)
    return neg_ll + reg, reg, logp


# -----------------------------------------------------------------------------
# Main
# -----------------------------------------------------------------------------
if __name__ == "__main__":
    config = dict(vocab_size=32, num_users=8, num_items=256, n_embd=32)
    B, T_prompt, T_main = 2, 8, 4
    D = config["n_embd"]
    total_tokens = config["vocab_size"] + config["num_users"] + config["num_items"]

    key = jax.random.PRNGKey(0)
    k_wte, k_wpe, k_ids, k_main, k_tgt, k_cont = jax.random.split(key, 6)

    params = {
        "wte": 0.02 * jax.random.normal(k_wte, (total_tokens, D), jnp.float32),
        "wpe": 0.02 * jax.random.normal(k_wpe, (T_prompt, D), jnp.float32),
    }

    input_ids = jax.random.randint(k_ids, (B, T_prompt), 0, total_tokens)
    main_ids = jax.random.randint(
        k_main, (B, T_main),
        config["vocab_size"] + config["num_users"], total_tokens)
    # attention mask: first row fully valid, second row padded after 5 tokens
    attention_mask = jnp.array(
        [[1] * T_prompt, [1] * 5 + [0] * (T_prompt - 5)], dtype=jnp.int32)
    # multinomial targets over items (multi-hot style counts)
    target_ids = (jax.random.uniform(k_tgt, (B, config["num_items"]))
                  < 0.05).astype(jnp.float32)
    content_embeds = 0.02 * jax.random.normal(
        k_cont, (B, T_prompt + T_main, D), jnp.float32)
    lambda_V = jnp.float32(0.1)

    neg_ll, reg_loss, item_log_probs = collaborative_recommend_forward(
        params, config, input_ids, target_ids, attention_mask,
        regularize=True, lambda_V=lambda_V, main_ids=main_ids,
        content_embeds=content_embeds)

    jax.block_until_ready((neg_ll, reg_loss, item_log_probs))

    # verify against a pure-JAX reference
    ref_neg_ll, ref_reg, ref_logp = reference_forward(
        params, config, input_ids, target_ids, attention_mask,
        lambda_V, main_ids, content_embeds)
    assert jnp.allclose(neg_ll, ref_neg_ll, rtol=1e-3, atol=1e-3)
    assert jnp.allclose(reg_loss, ref_reg, rtol=1e-3, atol=1e-3)
    assert jnp.allclose(item_log_probs, ref_logp, rtol=1e-3, atol=1e-3)

    print("KERNEL_OK")
</pallas_src>

<mosaic_0001>
module attributes {stable_mosaic.version = 11 : i64} {
  func.func @_item_head_kernel(%arg0: i32, %arg1: memref<2x32xf32, #tpu.memory_space<vmem>>, %arg2: memref<256x32xf32, #tpu.memory_space<vmem>>, %arg3: memref<2x256xf32, #tpu.memory_space<vmem>>, %arg4: memref<2x256xf32, #tpu.memory_space<vmem>>, %arg5: memref<2x128xf32, #tpu.memory_space<vmem>>, %arg6: memref<2x1xf32, #tpu.memory_space<vmem>>, %arg7: memref<2x1xf32, #tpu.memory_space<vmem>>, %arg8: memref<2x1xf32, #tpu.memory_space<vmem>>, %arg9: memref<2x1xf32, #tpu.memory_space<vmem>>) attributes {dimension_semantics = [#tpu.dimension_semantics<arbitrary>], iteration_bounds = array<i64: 1>, scalar_prefetch = 0 : i64, scratch_operands = 4 : i64, tpu.core_type = #tpu.core_type<tc>, window_params = [{pipeline_mode = #tpu.pipeline_mode<synchronous>, transform_indices = @transform_0, window_bounds = array<i64: 2, 32>}, {transform_indices = @transform_1, window_bounds = array<i64: 256, 32>}, {transform_indices = @transform_2, window_bounds = array<i64: 2, 256>}, {pipeline_mode = #tpu.pipeline_mode<synchronous>, transform_indices = @transform_3, window_bounds = array<i64: 2, 256>}, {pipeline_mode = #tpu.pipeline_mode<synchronous>, transform_indices = @transform_4, window_bounds = array<i64: 2, 128>}]} {
    %c0_i32 = arith.constant 0 : i32
    %0 = arith.cmpi eq, %arg0, %c0_i32 : i32
    %1 = arith.extui %0 : i1 to i32
    %c0_i32_0 = arith.constant 0 : i32
    %2 = arith.cmpi ne, %1, %c0_i32_0 : i32
    scf.if %2 {
      %cst_31 = arith.constant 0xFF800000 : f32
      %42 = vector.broadcast %cst_31 : f32 to vector<2x1xf32>
      %c0_32 = arith.constant 0 : index
      %c0_33 = arith.constant 0 : index
      %43 = vector.load %arg6[%c0_32, %c0_33] : memref<2x1xf32, #tpu.memory_space<vmem>>, vector<2x1xf32>
      tpu.vector_store %arg6[%c0_32, %c0_33], %42 {strides = array<i32>} : memref<2x1xf32, #tpu.memory_space<vmem>>, vector<2x1xf32>,
      %cst_34 = arith.constant 0.000000e+00 : f32
      %44 = vector.broadcast %cst_34 : f32 to vector<2x1xf32>
      %c0_35 = arith.constant 0 : index
      %c0_36 = arith.constant 0 : index
      %45 = vector.load %arg7[%c0_35, %c0_36] : memref<2x1xf32, #tpu.memory_space<vmem>>, vector<2x1xf32>
      tpu.vector_store %arg7[%c0_35, %c0_36], %44 {strides = array<i32>} : memref<2x1xf32, #tpu.memory_space<vmem>>, vector<2x1xf32>,
      %cst_37 = arith.constant 0.000000e+00 : f32
      %46 = vector.broadcast %cst_37 : f32 to vector<2x1xf32>
      %c0_38 = arith.constant 0 : index
      %c0_39 = arith.constant 0 : index
      %47 = vector.load %arg8[%c0_38, %c0_39] : memref<2x1xf32, #tpu.memory_space<vmem>>, vector<2x1xf32>
      tpu.vector_store %arg8[%c0_38, %c0_39], %46 {strides = array<i32>} : memref<2x1xf32, #tpu.memory_space<vmem>>, vector<2x1xf32>,
      %cst_40 = arith.constant 0.000000e+00 : f32
      %48 = vector.broadcast %cst_40 : f32 to vector<2x1xf32>
      %c0_41 = arith.constant 0 : index
      %c0_42 = arith.constant 0 : index
      %49 = vector.load %arg9[%c0_41, %c0_42] : memref<2x1xf32, #tpu.memory_space<vmem>>, vector<2x1xf32>
      tpu.vector_store %arg9[%c0_41, %c0_42], %48 {strides = array<i32>} : memref<2x1xf32, #tpu.memory_space<vmem>>, vector<2x1xf32>,
    } else {
    }
    %c0 = arith.constant 0 : index
    %c0_1 = arith.constant 0 : index
    %3 = vector.load %arg1[%c0, %c0_1] : memref<2x32xf32, #tpu.memory_space<vmem>>, vector<2x32xf32>
    %c0_2 = arith.constant 0 : index
    %c0_3 = arith.constant 0 : index
    %4 = vector.load %arg2[%c0_2, %c0_3] : memref<256x32xf32, #tpu.memory_space<vmem>>, vector<256x32xf32>
    %cst = arith.constant dense<0.000000e+00> : vector<2x256xf32>
    %5 = tpu.matmul %3, %4, %cst {dimension_numbers = #tpu.dot_dimension_numbers<[1], [1], [0], [0], [0, 0, 1, 0], [], []>} : vector<2x32xf32>, vector<256x32xf32>, vector<2x256xf32> -> vector<2x256xf32>
    %c0_4 = arith.constant 0 : index
    %c0_5 = arith.constant 0 : index
    %6 = vector.load %arg3[%c0_4, %c0_5] : memref<2x256xf32, #tpu.memory_space<vmem>>, vector<2x256xf32>
    %cst_6 = arith.constant dense<0xFF800000> : vector<2xf32>
    %7 = vector.multi_reduction <maximumf>, %5, %cst_6 [1] : vector<2x256xf32> to vector<2xf32>
    %8 = vector.shape_cast %7 : vector<2xf32> to vector<2x1xf32>
    %c0_7 = arith.constant 0 : index
    %c0_8 = arith.constant 0 : index
    %9 = vector.load %arg6[%c0_7, %c0_8] : memref<2x1xf32, #tpu.memory_space<vmem>>, vector<2x1xf32>
    %10 = arith.maximumf %9, %8 : vector<2x1xf32>
    %c0_9 = arith.constant 0 : index
    %c0_10 = arith.constant 0 : index
    %11 = vector.load %arg7[%c0_9, %c0_10] : memref<2x1xf32, #tpu.memory_space<vmem>>, vector<2x1xf32>
    %c0_11 = arith.constant 0 : index
    %c0_12 = arith.constant 0 : index
    %12 = vector.load %arg6[%c0_11, %c0_12] : memref<2x1xf32, #tpu.memory_space<vmem>>, vector<2x1xf32>
    %13 = arith.subf %12, %10 : vector<2x1xf32>
    %14 = math.exp %13 : vector<2x1xf32>
    %15 = arith.mulf %11, %14 : vector<2x1xf32>
    %16 = vector.broadcast %10 : vector<2x1xf32> to vector<2x256xf32>
    %17 = arith.subf %5, %16 : vector<2x256xf32>
    %18 = math.exp %17 : vector<2x256xf32>
    %cst_13 = arith.constant dense<0.000000e+00> : vector<2xf32>
    %19 = vector.multi_reduction <add>, %18, %cst_13 [1] : vector<2x256xf32> to vector<2xf32>
    %20 = vector.shape_cast %19 : vector<2xf32> to vector<2x1xf32>
    %21 = arith.addf %15, %20 : vector<2x1xf32>
    %c0_14 = arith.constant 0 : index
    %c0_15 = arith.constant 0 : index
    %22 = vector.load %arg7[%c0_14, %c0_15] : memref<2x1xf32, #tpu.memory_space<vmem>>, vector<2x1xf32>
    tpu.vector_store %arg7[%c0_14, %c0_15], %21 {strides = array<i32>} : memref<2x1xf32, #tpu.memory_space<vmem>>, vector<2x1xf32>,
    %c0_16 = arith.constant 0 : index
    %c0_17 = arith.constant 0 : index
    %23 = vector.load %arg6[%c0_16, %c0_17] : memref<2x1xf32, #tpu.memory_space<vmem>>, vector<2x1xf32>
    tpu.vector_store %arg6[%c0_16, %c0_17], %10 {strides = array<i32>} : memref<2x1xf32, #tpu.memory_space<vmem>>, vector<2x1xf32>,
    %c0_18 = arith.constant 0 : index
    %c0_19 = arith.constant 0 : index
    %24 = vector.load %arg8[%c0_18, %c0_19] : memref<2x1xf32, #tpu.memory_space<vmem>>, vector<2x1xf32>
    %25 = arith.mulf %5, %6 : vector<2x256xf32>
    %cst_20 = arith.constant dense<0.000000e+00> : vector<2xf32>
    %26 = vector.multi_reduction <add>, %25, %cst_20 [1] : vector<2x256xf32> to vector<2xf32>
    %27 = vector.shape_cast %26 : vector<2xf32> to vector<2x1xf32>
    %28 = arith.addf %24, %27 : vector<2x1xf32>
    %c0_21 = arith.constant 0 : index
    %c0_22 = arith.constant 0 : index
    %29 = vector.load %arg8[%c0_21, %c0_22] : memref<2x1xf32, #tpu.memory_space<vmem>>, vector<2x1xf32>
    tpu.vector_store %arg8[%c0_21, %c0_22], %28 {strides = array<i32>} : memref<2x1xf32, #tpu.memory_space<vmem>>, vector<2x1xf32>,
    %c0_23 = arith.constant 0 : index
    %c0_24 = arith.constant 0 : index
    %30 = vector.load %arg9[%c0_23, %c0_24] : memref<2x1xf32, #tpu.memory_space<vmem>>, vector<2x1xf32>
    %cst_25 = arith.constant dense<0.000000e+00> : vector<2xf32>
    %31 = vector.multi_reduction <add>, %6, %cst_25 [1] : vector<2x256xf32> to vector<2xf32>
    %32 = vector.shape_cast %31 : vector<2xf32> to vector<2x1xf32>
    %33 = arith.addf %30, %32 : vector<2x1xf32>
    %c0_26 = arith.constant 0 : index
    %c0_27 = arith.constant 0 : index
    %34 = vector.load %arg9[%c0_26, %c0_27] : memref<2x1xf32, #tpu.memory_space<vmem>>, vector<2x1xf32>
    tpu.vector_store %arg9[%c0_26, %c0_27], %33 {strides = array<i32>} : memref<2x1xf32, #tpu.memory_space<vmem>>, vector<2x1xf32>,
    %c256_i32 = arith.constant 256 : i32
    %35 = arith.muli %arg0, %c256_i32 : i32
    %36 = tpu.assume_multiple %35, 256 : i32
    %c0_28 = arith.constant 0 : index
    %37 = arith.index_cast %36 : i32 to index
    %38 = vector.load %arg4[%c0_28, %37] : memref<2x256xf32, #tpu.memory_space<vmem>>, vector<2x256xf32>
    tpu.vector_store %arg4[%c0_28, %37], %5 {strides = array<i32>} : memref<2x256xf32, #tpu.memory_space<vmem>>, vector<2x256xf32>,
    %c0_i32_29 = arith.constant 0 : i32
    %39 = arith.cmpi eq, %arg0, %c0_i32_29 : i32
    %40 = arith.extui %39 : i1 to i32
    %c0_i32_30 = arith.constant 0 : i32
    %41 = arith.cmpi ne, %40, %c0_i32_30 : i32
    scf.if %41 {
      %c0_31 = arith.constant 0 : index
      %c0_32 = arith.constant 0 : index
      %42 = vector.load %arg6[%c0_31, %c0_32] : memref<2x1xf32, #tpu.memory_space<vmem>>, vector<2x1xf32>
      %c0_33 = arith.constant 0 : index
      %c0_34 = arith.constant 0 : index
      %43 = vector.load %arg7[%c0_33, %c0_34] : memref<2x1xf32, #tpu.memory_space<vmem>>, vector<2x1xf32>
      %44 = math.log %43 : vector<2x1xf32>
      %45 = arith.addf %42, %44 : vector<2x1xf32>
      %c0_35 = arith.constant 0 : index
      %c0_36 = arith.constant 0 : index
      %46 = vector.load %arg4[%c0_35, %c0_36] : memref<2x256xf32, #tpu.memory_space<vmem>>, vector<2x256xf32>
      %47 = vector.broadcast %45 : vector<2x1xf32> to vector<2x256xf32>
      %48 = arith.subf %46, %47 : vector<2x256xf32>
      %c0_37 = arith.constant 0 : index
      %c0_38 = arith.constant 0 : index
      %49 = vector.load %arg4[%c0_37, %c0_38] : memref<2x256xf32, #tpu.memory_space<vmem>>, vector<2x256xf32>
      tpu.vector_store %arg4[%c0_37, %c0_38], %48 {strides = array<i32>} : memref<2x256xf32, #tpu.memory_space<vmem>>, vector<2x256xf32>,
      %c0_39 = arith.constant 0 : index
      %c0_40 = arith.constant 0 : index
      %50 = vector.load %arg8[%c0_39, %c0_40] : memref<2x1xf32, #tpu.memory_space<vmem>>, vector<2x1xf32>
      %c0_41 = arith.constant 0 : index
      %c0_42 = arith.constant 0 : index
      %51 = vector.load %arg9[%c0_41, %c0_42] : memref<2x1xf32, #tpu.memory_space<vmem>>, vector<2x1xf32>
      %52 = arith.mulf %45, %51 : vector<2x1xf32>
      %53 = arith.subf %50, %52 : vector<2x1xf32>
      %54 = vector.shape_cast %53 : vector<2x1xf32> to vector<2x1xf32>
      %55 = vector.broadcast %54 : vector<2x1xf32> to vector<2x128xf32>
      %c0_43 = arith.constant 0 : index
      %c0_44 = arith.constant 0 : index
      %56 = vector.load %arg5[%c0_43, %c0_44] : memref<2x128xf32, #tpu.memory_space<vmem>>, vector<2x128xf32>
      tpu.vector_store %arg5[%c0_43, %c0_44], %55 {strides = array<i32>} : memref<2x128xf32, #tpu.memory_space<vmem>>, vector<2x128xf32>,
    } else {
    }
    return
  }
  func.func @transform_0(%arg0: i32) -> (i32, i32) {
    %c0_i32 = arith.constant 0 : i32
    %c0_i32_0 = arith.constant 0 : i32
    %c0_i32_1 = arith.constant 0 : i32
    return %c0_i32, %c0_i32_0 : i32, i32
  }
  func.func @transform_1(%arg0: i32) -> (i32, i32) {
    %c0_i32 = arith.constant 0 : i32
    %c0_i32_0 = arith.constant 0 : i32
    return %arg0, %c0_i32 : i32, i32
  }
  func.func @transform_2(%arg0: i32) -> (i32, i32) {
    %c0_i32 = arith.constant 0 : i32
    %c0_i32_0 = arith.constant 0 : i32
    return %c0_i32, %arg0 : i32, i32
  }
  func.func @transform_3(%arg0: i32) -> (i32, i32) {
    %c0_i32 = arith.constant 0 : i32
    %c0_i32_0 = arith.constant 0 : i32
    %c0_i32_1 = arith.constant 0 : i32
    return %c0_i32, %c0_i32_0 : i32, i32
  }
  func.func @transform_4(%arg0: i32) -> (i32, i32) {
    %c0_i32 = arith.constant 0 : i32
    %c0_i32_0 = arith.constant 0 : i32
    %c0_i32_1 = arith.constant 0 : i32
    return %c0_i32, %c0_i32_0 : i32, i32
  }
}

</mosaic_0001>

<llo_original>
// kernel: tpu_custom_call.1
$region0: #{tpu_custom_call.1}
  #allocation0 [shape = 'u32[]', space=smem, size = 0x4, offset = 0x4, fixed_abs, tag = 'smem constant byte address 0x4 - core index']
  #allocation1 [shape = 'u32[144,128]{1,0:T(1,128)}', space=vmem, size = 0x12000, scoped, tag = 'internal scratch']
  #allocation2 [shape = 'f32[2,1]{1,0:T(2,128)}', space=vmem, size = 0x400, scoped, tag = 'scratch operand']
  #allocation3 [shape = 'f32[2,1]{1,0:T(2,128)}', space=vmem, size = 0x400, scoped, tag = 'scratch operand']
  #allocation4 [shape = 'f32[2,1]{1,0:T(2,128)}', space=vmem, size = 0x400, scoped, tag = 'scratch operand']
  #allocation5 [shape = 'f32[2,1]{1,0:T(2,128)}', space=vmem, size = 0x400, scoped, tag = 'scratch operand']
  %s0 = inlined_call_operand.vmem [shape: f32[2,32], index: 0, kind: input, shape index: {}]
  %s1 = inlined_call_operand.vmem [shape: f32[256,32], index: 1, kind: input, shape index: {}]
  %s2 = inlined_call_operand.vmem [shape: f32[2,256], index: 2, kind: input, shape index: {}]
  %s3 = inlined_call_operand.hbm [shape: f32[2,256], index: 3, kind: output, shape index: {0}]
  %s4 = inlined_call_operand.hbm [shape: f32[2,128], index: 4, kind: output, shape index: {1}]
  %5 = xla_tuple %s3, %s4
  %s6 = sld [smem:[#allocation0]]
  $region38: #{tpu_custom_call.1} parent=0
    _
  %s8 = ssub.s32 1, %s6
  %s9 = scalar_select 0, %s8, %s6
  $region1: #{tpu_custom_call.1} parent=0
    #allocation6 [shape = 'u8[2048]{0}', space=vmem, size = 0x800, scoped, tag = 'output window, operand 0, single buffered']
    #allocation7 [shape = 's32[1]{0}', space=sflag, size = 0x4, scoped, tag = 'scoped memory for tpu_custom_call.1']
    #allocation8 [shape = 'u8[1024]{0}', space=vmem, size = 0x400, scoped, tag = 'output window, operand 1, single buffered']
    #allocation9 [shape = 's32[1]{0}', space=sflag, size = 0x4, scoped, tag = 'scoped memory for tpu_custom_call.1']
    %10 = vsyncpa [#allocation7], 0
    %11 = vsyncpa [#allocation9], 0
    // Predicated region
    $region2: #{tpu_custom_call.1} parent=1 // pred_check
      _
    $region3: #{tpu_custom_call.1} parent=1 // pred_check_branch
      %13 = sbr.rel (0) target = $region5
    $region4: #{tpu_custom_call.1} parent=1 // pred_region
      _
    $region5: #{tpu_custom_call.1} parent=1 // pred_fallthru
      _
    // Predicated region
    $region6: #{tpu_custom_call.1} parent=1 // pred_check
      _
    $region7: #{tpu_custom_call.1} parent=1 // pred_check_branch
      %15 = sbr.rel (0) target = $region9
    $region8: #{tpu_custom_call.1} parent=1 // pred_region
      _
    $region9: #{tpu_custom_call.1} parent=1 // pred_fallthru
      _
    // Predicated region
    $region10: #{tpu_custom_call.1} parent=1 // pred_check
      _
    $region11: #{tpu_custom_call.1} parent=1 // pred_check_branch
      %17 = sbr.rel (0) target = $region13
    $region12: #{tpu_custom_call.1} parent=1 // pred_region
      _
    $region13: #{tpu_custom_call.1} parent=1 // pred_fallthru
      _
    %p18 = scmp.eq.s32.totalorder 0, 0
    // Predicated region
    $region14: #{tpu_custom_call.1} parent=1 // pred_check
      %p19 = pneg %p18
    $region15: #{tpu_custom_call.1} parent=1 // pred_check_branch
      %21 = sbr.rel (%p19) target = $region17
    $region16: #{tpu_custom_call.1} parent=1 // pred_region
      %vm22 = vcmask 1024
      %23 = vst.msk [vmem:[#allocation2] sm:$0x3] %vm22, -inf
      %24 = vst.msk [vmem:[#allocation3] sm:$0x3] %vm22, 0.0
      %25 = vst.msk [vmem:[#allocation4] sm:$0x3] %vm22, 0.0
      %26 = vst.msk [vmem:[#allocation5] sm:$0x3] %vm22, 0.0
    $region17: #{tpu_custom_call.1} parent=1 // pred_fallthru
      _
    %v27 = vld [vmem:[%s0] sm:$0x3]
    %v28 = vld [vmem:[%s1] sm:$0xff]
    %v29 = vld [vmem:[%s1 + $0x8] sm:$0xff]
    %v30 = vld [vmem:[%s1 + $0x10] sm:$0xff]
    %v31 = vld [vmem:[%s1 + $0x18] sm:$0xff]
    %v32 = vld [vmem:[%s1 + $0x20] sm:$0xff]
    %v33 = vld [vmem:[%s1 + $0x28] sm:$0xff]
    %v34 = vld [vmem:[%s1 + $0x30] sm:$0xff]
    %v35 = vld [vmem:[%s1 + $0x38] sm:$0xff]
    %v36 = vld [vmem:[%s1 + $0x40] sm:$0xff]
    %v37 = vld [vmem:[%s1 + $0x48] sm:$0xff]
    %v38 = vld [vmem:[%s1 + $0x50] sm:$0xff]
    %v39 = vld [vmem:[%s1 + $0x58] sm:$0xff]
    %v40 = vld [vmem:[%s1 + $0x60] sm:$0xff]
    %v41 = vld [vmem:[%s1 + $0x68] sm:$0xff]
    %v42 = vld [vmem:[%s1 + $0x70] sm:$0xff]
    %v43 = vld [vmem:[%s1 + $0x78] sm:$0xff]
    %v44 = vld [vmem:[%s1 + $0x80] sm:$0xff]
    %v45 = vld [vmem:[%s1 + $0x88] sm:$0xff]
    %v46 = vld [vmem:[%s1 + $0x90] sm:$0xff]
    %v47 = vld [vmem:[%s1 + $0x98] sm:$0xff]
    %v48 = vld [vmem:[%s1 + $0xa0] sm:$0xff]
    %v49 = vld [vmem:[%s1 + $0xa8] sm:$0xff]
    %v50 = vld [vmem:[%s1 + $0xb0] sm:$0xff]
    %v51 = vld [vmem:[%s1 + $0xb8] sm:$0xff]
    %v52 = vld [vmem:[%s1 + $0xc0] sm:$0xff]
    %v53 = vld [vmem:[%s1 + $0xc8] sm:$0xff]
    %v54 = vld [vmem:[%s1 + $0xd0] sm:$0xff]
    %v55 = vld [vmem:[%s1 + $0xd8] sm:$0xff]
    %v56 = vld [vmem:[%s1 + $0xe0] sm:$0xff]
    %v57 = vld [vmem:[%s1 + $0xe8] sm:$0xff]
    %v58 = vld [vmem:[%s1 + $0xf0] sm:$0xff]
    %v59 = vld [vmem:[%s1 + $0xf8] sm:$0xff]
    %vm60 = vcmask 261120
    %v62 = vsel %vm60, %v27, 0
    %v65 = vsel %vm60, %v28, 0
    %v68 = vsel %vm60, %v29, 0
    %v71 = vsel %vm60, %v30, 0
    %v74 = vsel %vm60, %v31, 0
    %v77 = vsel %vm60, %v32, 0
    %v80 = vsel %vm60, %v33, 0
    %v83 = vsel %vm60, %v34, 0
    %v86 = vsel %vm60, %v35, 0
    %v89 = vsel %vm60, %v36, 0
    %v92 = vsel %vm60, %v37, 0
    %v95 = vsel %vm60, %v38, 0
    %v98 = vsel %vm60, %v39, 0
    %v101 = vsel %vm60, %v40, 0
    %v104 = vsel %vm60, %v41, 0
    %v107 = vsel %vm60, %v42, 0
    %v110 = vsel %vm60, %v43, 0
    %v113 = vsel %vm60, %v44, 0
    %v116 = vsel %vm60, %v45, 0
    %v119 = vsel %vm60, %v46, 0
    %v122 = vsel %vm60, %v47, 0
    %v125 = vsel %vm60, %v48, 0
    %v128 = vsel %vm60, %v49, 0
    %v131 = vsel %vm60, %v50, 0
    %v134 = vsel %vm60, %v51, 0
    %v137 = vsel %vm60, %v52, 0
    %v140 = vsel %vm60, %v53, 0
    %v143 = vsel %vm60, %v54, 0
    %v146 = vsel %vm60, %v55, 0
    %v149 = vsel %vm60, %v56, 0
    %v152 = vsel %vm60, %v57, 0
    %v155 = vsel %vm60, %v58, 0
    %v158 = vsel %vm60, %v59, 0
    %160 = vmatprep.subr.mxu0 0.0
    %161 = vmatpush1.xpose.msra.mxu0 %v110
    %162 = vmatprep.subr.mxu0 0.0
    %163 = vmatpush1.xpose.msra.mxu0 %v107
    %164 = vmatprep.subr.mxu0 0.0
    %165 = vmatpush1.xpose.msra.mxu0 %v104
    %166 = vmatprep.subr.mxu0 0.0
    %167 = vmatpush1.xpose.msra.mxu0 %v101
    %168 = vmatprep.subr.mxu0 0.0
    %169 = vmatpush1.xpose.msra.mxu0 %v98
    %170 = vmatprep.subr.mxu0 0.0
    %171 = vmatpush1.xpose.msra.mxu0 %v95
    %172 = vmatprep.subr.mxu0 0.0
    %173 = vmatpush1.xpose.msra.mxu0 %v92
    %174 = vmatprep.subr.mxu0 0.0
    %175 = vmatpush1.xpose.msra.mxu0 %v89
    %176 = vmatprep.subr.mxu0 0.0
    %177 = vmatpush1.xpose.msra.mxu0 %v86
    %178 = vmatprep.subr.mxu0 0.0
    %179 = vmatpush1.xpose.msra.mxu0 %v83
    %180 = vmatprep.subr.mxu0 0.0
    %181 = vmatpush1.xpose.msra.mxu0 %v80
    %182 = vmatprep.subr.mxu0 0.0
    %183 = vmatpush1.xpose.msra.mxu0 %v77
    %184 = vmatprep.subr.mxu0 0.0
    %185 = vmatpush1.xpose.msra.mxu0 %v74
    %186 = vmatprep.subr.mxu0 0.0
    %187 = vmatpush1.xpose.msra.mxu0 %v71
    %188 = vmatprep.subr.mxu0 0.0
    %189 = vmatpush1.xpose.msra.mxu0 %v68
    %190 = vmatprep.subr.mxu0 0.0
    %191 = vmatpush1.xpose.msra.mxu0 %v65
    %192 = vmatprep.subr.mxu0 0.0
    %193 = vmatpush2.xpose.msra.mxu0 %v158
    %194 = vmatprep.subr.mxu0 0.0
    %195 = vmatpush2.xpose.msra.mxu0 %v155
    %196 = vmatprep.subr.mxu0 0.0
    %197 = vmatpush2.xpose.msra.mxu0 %v152
    %198 = vmatprep.subr.mxu0 0.0
    %199 = vmatpush2.xpose.msra.mxu0 %v149
    %200 = vmatprep.subr.mxu0 0.0
    %201 = vmatpush2.xpose.msra.mxu0 %v146
    %202 = vmatprep.subr.mxu0 0.0
    %203 = vmatpush2.xpose.msra.mxu0 %v143
    %204 = vmatprep.subr.mxu0 0.0
    %205 = vmatpush2.xpose.msra.mxu0 %v140
    %206 = vmatprep.subr.mxu0 0.0
    %207 = vmatpush2.xpose.msra.mxu0 %v137
    %208 = vmatprep.subr.mxu0 0.0
    %209 = vmatpush2.xpose.msra.mxu0 %v134
    %210 = vmatprep.subr.mxu0 0.0
    %211 = vmatpush2.xpose.msra.mxu0 %v131
    %212 = vmatprep.subr.mxu0 0.0
    %213 = vmatpush2.xpose.msra.mxu0 %v128
    %214 = vmatprep.subr.mxu0 0.0
    %215 = vmatpush2.xpose.msra.mxu0 %v125
    %216 = vmatprep.subr.mxu0 0.0
    %217 = vmatpush2.xpose.msra.mxu0 %v122
    %218 = vmatprep.subr.mxu0 0.0
    %219 = vmatpush2.xpose.msra.mxu0 %v119
    %220 = vmatprep.subr.mxu0 0.0
    %221 = vmatpush2.xpose.msra.mxu0 %v116
    %222 = vmatprep.subr.mxu0 0.0
    %223 = vmatpush2.xpose.msra.mxu0 %v113
    %224 = vmatprep.mubr.f32.mxu0 0.0
    %225 = vmatmul.mubr.f32.gmra.mxu0 %v62
    %v226 = vpop.f32.mrf.mxu0
    %v227 = vadd.f32 0.0, %v226
    %v228 = vpop.f32.mrf.mxu0
    %v229 = vadd.f32 0.0, %v228
    %230 = vdwg.mxu0
    %v231 = vld [vmem:[%s2] sm:$0xf]
    %vm232 = vcmask 1041408
    %v233 = vsel %vm232, %v227, -inf
    %v234 = vsel %vm232, %v229, -inf
    %v235 = vmax.f32 %v233, %v234
    %236 = vmax.xlane.f32.xlu0 %v235
    %v237 = vpop.xlane.xlu0 %236
    %v238 = vld [vmem:[#allocation2] sm:$0x3]
    %v239 = vmax.f32 %v238, %v237
    %v240 = vld [vmem:[#allocation3] sm:$0x3]
    %v241 = vsub.f32 %v238, %v239
    %v242 = vmul.f32 %v241, 1.442695
    %v243 = vpow.pop %v242
    %v244 = vmul.f32 %v240, %v243
    %246 = vset.pattern.permute.xlu0 0
    %247 = vperm.xlu0 %246, %v239
    %v248 = vpop.permute.xlu0 %247
    %v250 = vsub.f32 %v227, %v248
    %v251 = vsub.f32 %v229, %v248
    %v252 = vmul.f32 %v250, 1.442695
    %v253 = vpow.pop %v252
    %v254 = vmul.f32 %v251, 1.442695
    %v255 = vpow.pop %v254
    %v256 = vsel %vm232, %v253, 0.0
    %v257 = vsel %vm232, %v255, 0.0
    %v258 = vadd.f32 %v256, %v257
    %259 = vadd.xlane.f32.xlu0 %v258
    %v260 = vpop.xlane.xlu0 %259
    %v261 = vadd.f32 %v244, %v260
    %vm262 = vcmask 1024
    %263 = vst.msk [vmem:[#allocation3] sm:$0x3] %vm262, %v261
    %264 = vst.msk [vmem:[#allocation2] sm:$0x3] %vm262, %v239
    %v265 = vld [vmem:[#allocation4] sm:$0x3]
    %v268 = vunpack.c.l.s4 1983009808
    %v269 = vunpack.c.0.s8 %v268
    %v270 = vlaneseq
    %v271 = vshrl.u32 %v270, 7
    %v272 = vsub.s32 %v269, %v271
    %v273 = vrot.slane %v231, %v272
    %v274 = vcombine.high %v273, %v273
    %v277 = vmul.f32 %v227, %v273
    %v278 = vmul.f32 %v229, %v274
    %v279 = vsel %vm232, %v277, 0.0
    %v280 = vsel %vm232, %v278, 0.0
    %v281 = vadd.f32 %v279, %v280
    %282 = vadd.xlane.f32.xlu0 %v281
    %v283 = vpop.xlane.xlu0 %282
    %v284 = vadd.f32 %v265, %v283
    %285 = vst.msk [vmem:[#allocation4] sm:$0x3] %vm262, %v284
    %v286 = vld [vmem:[#allocation5] sm:$0x3]
    %v287 = vsel %vm232, %v273, 0.0
    %v288 = vsel %vm232, %v274, 0.0
    %v289 = vadd.f32 %v287, %v288
    %290 = vadd.xlane.f32.xlu0 %v289
    %v291 = vpop.xlane.xlu0 %290
    %v292 = vadd.f32 %v286, %v291
    %293 = vst.msk [vmem:[#allocation5] sm:$0x3] %vm262, %v292
    %s294 = smul.u32 0, 256
    %v297 = vcombine.low %v227, %v229
    %v299 = vunpack.c.l.s4 1983009808
    %v300 = vunpack.c.0.s8 %v299
    %v301 = vlaneseq
    %v302 = vshrl.u32 %v301, 7
    %v303 = vsub.s32 %v300, %v302
    %v304 = vrot.slane %v297, %v303
    %s306 = sshra.s32 %s294, 7
    %s307 = sand.u32 %s294, 127
    %s308 = smul.addr %s306, 2
    %s309 = scalar_lea.vmem [#allocation6], %s308
    %310 = vst [vmem:[%s309] sm:$0xf] %v304
    // Predicated region
    $region18: #{tpu_custom_call.1} parent=1 // pred_check
      %p311 = pneg %p18
    $region19: #{tpu_custom_call.1} parent=1 // pred_check_branch
      %313 = sbr.rel (%p311) target = $region21
    $region20: #{tpu_custom_call.1} parent=1 // pred_region
      %v314 = vld [vmem:[#allocation2] sm:$0x3]
      %v315 = vld [vmem:[#allocation3] sm:$0x3]
      %v316 = vlog2.pop %v315
      %v317 = vmul.f32 %v316, 0.6931472
      %v318 = vadd.f32 %v314, %v317
      %v319 = vld [vmem:[#allocation6] sm:$0xf]
      %321 = vset.pattern.permute.xlu0 0
      %322 = vperm.xlu0 %321, %v318
      %v323 = vpop.permute.xlu0 %322
      %v325 = vunpack.c.l.s4 269488144
      %v326 = vunpack.c.0.s8 %v325
      %v327 = vlaneseq
      %v328 = vshrl.u32 %v327, 7
      %v329 = vsub.s32 %v326, %v328
      %v330 = vrot.slane %v323, %v329
      %v332 = vsub.f32 %v319, %v330
      %333 = vst [vmem:[#allocation6] sm:$0xf] %v332
      %v334 = vld [vmem:[#allocation4] sm:$0x3]
      %v335 = vld [vmem:[#allocation5] sm:$0x3]
      %v336 = vmul.f32 %v318, %v335
      %v337 = vsub.f32 %v334, %v336
      %339 = vset.pattern.permute.xlu0 0
      %340 = vperm.xlu0 %339, %v337
      %v341 = vpop.permute.xlu0 %340
      %343 = vst [vmem:[#allocation8] sm:$0x3] %v341
    $region21: #{tpu_custom_call.1} parent=1 // pred_fallthru
      _
    // Predicated region
    $region22: #{tpu_custom_call.1} parent=1 // pred_check
      _
    $region23: #{tpu_custom_call.1} parent=1 // pred_check_branch
      %345 = sbr.rel (0) target = $region25
    $region24: #{tpu_custom_call.1} parent=1 // pred_region
      %s347 = ssub.s32 64, 64
      %348 = vsyncadd [#allocation7], %s347
      %s350 = sshll.u32 [#allocation6], 4
      %s351 = int_to_ptr.vmem [resolvable:$true] %s350
      %353 = dma.vmem_to_hbm [thread:$0]  %s351, 64, %s3, [#allocation7]
    $region25: #{tpu_custom_call.1} parent=1 // pred_fallthru
      _
    // Predicated region
    $region26: #{tpu_custom_call.1} parent=1 // pred_check
      _
    $region27: #{tpu_custom_call.1} parent=1 // pred_check_branch
      %355 = sbr.rel (0) target = $region29
    $region28: #{tpu_custom_call.1} parent=1 // pred_region
      %s357 = ssub.s32 32, 32
      %358 = vsyncadd [#allocation9], %s357
      %s360 = sshll.u32 [#allocation8], 4
      %s361 = int_to_ptr.vmem [resolvable:$true] %s360
      %363 = dma.vmem_to_hbm [thread:$0]  %s361, 32, %s4, [#allocation9]
    $region29: #{tpu_custom_call.1} parent=1 // pred_fallthru
      _
    // Predicated region
    $region30: #{tpu_custom_call.1} parent=1 // pred_check
      _
    $region31: #{tpu_custom_call.1} parent=1 // pred_check_branch
      %365 = sbr.rel (0) target = $region33
    $region32: #{tpu_custom_call.1} parent=1 // pred_region
      %366 = dma.done [#allocation7], 64
    $region33: #{tpu_custom_call.1} parent=1 // pred_fallthru
      _
    // Predicated region
    $region34: #{tpu_custom_call.1} parent=1 // pred_check
      _
    $region35: #{tpu_custom_call.1} parent=1 // pred_check_branch
      %368 = sbr.rel (0) target = $region37
    $region36: #{tpu_custom_call.1} parent=1 // pred_region
      %369 = dma.done [#allocation9], 32
    $region37: #{tpu_custom_call.1} parent=1 // pred_fallthru
      _
    %370 = vsyncpa [#allocation7], 1
    %371 = vsyncpa [#allocation9], 1

</llo_original>
